<compile_context>
chip_gen: v5e
topology: v5e:2x2
jax: 0.10.0
libtpu: 0.0.40
codegen_flags: <defaults>
</compile_context>

<pallas_src>
import numpy as np
import jax
import jax.numpy as jnp
from jax import lax
from jax.experimental import pallas as pl
from jax.experimental.pallas import tpu as pltpu


# ----------------------------- Pallas kernel -----------------------------

def linear_trend_kernel(x_ref, p_ref, o_ref):
    # x_ref, o_ref: (TILE_R, W)        input / output tile
    # p_ref:        (TILE_R, 4) int32  packed per-row params:
    #   col 0: slope (f32 bits), col 1: bias (f32 bits),
    #   col 2: window start,     col 3: window length (0 => no trend)
    tile_r, w = x_ref.shape

    p = p_ref[...]                                        # one narrow load
    slope = pltpu.bitcast(p[:, 0:1], jnp.float32)         # (TILE_R, 1) f32
    bias = pltpu.bitcast(p[:, 1:2], jnp.float32)          # (TILE_R, 1) f32
    start = p[:, 2:3]                                     # (TILE_R, 1) i32
    length = p[:, 3:4]                                    # (TILE_R, 1) i32

    t = lax.broadcasted_iota(jnp.int32, (tile_r, w), 1)   # time index per lane
    tr = t - start                                        # (TILE_R, W) i32
    # Single unsigned compare covers both bounds: negative tr wraps to a huge
    # uint32, so (0 <= tr < length) == (uint32(tr) < uint32(length)).
    # Valid because length >= 0 (guaranteed by the host-side param setup).
    in_window = tr.astype(jnp.uint32) < length.astype(jnp.uint32)
    trend = jnp.where(in_window,
                      slope * tr.astype(jnp.float32) + bias,
                      jnp.zeros((), jnp.float32))         # (TILE_R, W) f32

    if o_ref.dtype == jnp.float32:
        o_ref[...] = x_ref[...] + trend
    else:
        # Sub-32-bit data path: downcast the trend once, add natively
        # (bf16 VPU on v6e/v7x; on v5e the compiler upcasts internally).
        o_ref[...] = x_ref[...] + trend.astype(o_ref.dtype)


# ------------------------------ tiling glue ------------------------------

def _default_budget():
    """(target_block_bytes, vmem_limit_bytes) tuned per TPU generation."""
    try:
        vmem_cap = pltpu.get_tpu_info().vmem_capacity_bytes
    except Exception:
        vmem_cap = 128 * 1024 * 1024
    if vmem_cap <= 64 * 1024 * 1024:
        # v7x-class: 64 MiB VMEM/TC but ~3.2 TB/s HBM -> larger blocks to
        # amortize the ~0.35us/step overhead; 2x in + 2x out = 32 MiB < 48.
        return 8 << 20, 48 << 20
    # v5e/v6e: ~4 MiB tiles already sit near the HBM roofline; 32 MiB limit
    # (above v5e's 16 MiB scoped default) leaves double-buffer headroom.
    return 4 << 20, 32 << 20


def _choose_tile_rows(n_rows, width, itemsize, target_block_bytes,
                      min_grid_steps=2):
    """Row tile: dtype-aligned, under the byte budget, and small enough that
    the row grid has >= min_grid_steps steps (v7x megacore sharding)."""
    row_align = 8 * max(1, 4 // max(1, itemsize))   # 8 f32 / 16 bf16 / 32 i8
    bytes_per_row = max(1, width * itemsize)
    tile = (target_block_bytes // bytes_per_row) // row_align * row_align
    tile = max(row_align, tile)
    if min_grid_steps > 1 and n_rows > row_align:
        cap = max(row_align,
                  (-(-n_rows // min_grid_steps)) // row_align * row_align)
        tile = min(tile, cap)
    # never exceed the aligned-up row extent
    tile = min(tile, -(-n_rows // row_align) * row_align)
    return tile


def linear_trend_add(x, slope_c, bias_c, start_c, len_c, *,
                     target_block_bytes=None, vmem_limit_bytes=None,
                     min_grid_steps=2):
    """x: (..., H, W); slope/bias: (H,) f32; start/len: (H,) i32.

    Adds the per-sensor masked linear trend to x (streaming, HBM-bound).
    Callers relying on the in-place alias should donate x at the jit boundary
    (jax.jit(..., donate_argnums=...)) to avoid a defensive copy."""
    if target_block_bytes is None or vmem_limit_bytes is None:
        tb, vl = _default_budget()
        if target_block_bytes is None:
            target_block_bytes = tb
        if vmem_limit_bytes is None:
            vmem_limit_bytes = vl

    *lead, H, W = x.shape
    B = int(np.prod(lead)) if lead else 1
    R = B * H
    itemsize = jnp.dtype(x.dtype).itemsize

    # Lane-dense output: pad W up to a multiple of 128 (unmasked full-lane
    # stores).  Padded lanes fall outside every window => pass-through.
    W_pad = ((W + 127) // 128) * 128

    tile_r = _choose_tile_rows(R, W_pad, itemsize, target_block_bytes,
                               min_grid_steps)
    R_pad = ((R + tile_r - 1) // tile_r) * tile_r

    x2 = x.reshape(R, W)
    if (R_pad != R) or (W_pad != W):
        x2 = jnp.pad(x2, ((0, R_pad - R), (0, W_pad - W)))

    # Pack the four per-sensor params into one (R, 4) int32 array (slope/bias
    # as raw f32 bits) so each grid step issues one param DMA instead of four.
    params_h = jnp.stack(
        [lax.bitcast_convert_type(slope_c.astype(jnp.float32), jnp.int32),
         lax.bitcast_convert_type(bias_c.astype(jnp.float32), jnp.int32),
         start_c.astype(jnp.int32),
         len_c.astype(jnp.int32)], axis=-1)               # (H, 4)
    params = jnp.tile(params_h, (B, 1))                   # row b*H+h -> sensor h
    if R_pad != R:
        params = jnp.pad(params, ((0, R_pad - R), (0, 0)))  # len=0 -> no-op

    grid = (R_pad // tile_r,)
    data_spec = pl.BlockSpec((tile_r, W_pad), lambda r: (r, 0))
    param_spec = pl.BlockSpec((tile_r, 4), lambda r: (r, 0))

    out = pl.pallas_call(
        linear_trend_kernel,
        out_shape=jax.ShapeDtypeStruct((R_pad, W_pad), x.dtype),
        grid=grid,
        in_specs=[data_spec, param_spec],
        out_specs=data_spec,
        input_output_aliases={0: 0},        # in-place augmentation add
        compiler_params=pltpu.CompilerParams(
            dimension_semantics=("parallel",),
            vmem_limit_bytes=vmem_limit_bytes),
    )(x2, params)

    if (R_pad != R) or (W_pad != W):
        out = out[:R, :W]
    return out.reshape(x.shape)


# --------------------- parameter setup (init-time glue) ---------------------

def make_linear_trend_params(key, H, W,
                             slope=(-1.0, 1.0), bias=(0.0, 0.0),
                             length=None, channels=1):
    """Reproduces the random draws of LinearTrend.forward deterministically.

    Host-side glue: randperm / randint channel selection and window starts
    have no clean in-kernel equivalent; the hot path (masked ramp add) runs
    in the Pallas kernel."""
    k_slope, k_bias, k_len, k_perm, k_count, k_start = jax.random.split(key, 6)

    if isinstance(slope, float):
        slope_h = np.ones(H, np.float32) * slope
    else:
        slope_h = np.asarray(
            (slope[0] - slope[1]) * jax.random.uniform(k_slope, (H,)) + slope[1],
            np.float32)
    if isinstance(bias, float):
        bias_h = np.ones(H, np.float32) * bias
    else:
        bias_h = np.asarray(
            (bias[0] - bias[1]) * jax.random.uniform(k_bias, (H,)) + bias[1],
            np.float32)

    length_val = W if not length else length
    if isinstance(length_val, int):
        length_h = np.ones(H, np.int32) * length_val
    else:
        length_h = np.asarray(
            jax.random.randint(k_len, (H,), length_val[0], length_val[1]),
            np.int32)

    channels_val = H if not channels else channels
    perm = np.asarray(jax.random.permutation(k_perm, H))
    if isinstance(channels_val, int):
        selected = perm[:channels_val]
    else:
        n = int(jax.random.randint(k_count, (), channels_val[0],
                                   channels_val[1] + 1))
        selected = perm[:n]

    # Dense per-sensor parameter vectors; unselected sensors get length 0
    # (=> empty window => no trend), matching the loop in the PyTorch code.
    # TODO(synk): probability gate (apply-with-prob) would also be drawn here;
    # the reference forward never consults it, so nothing to do for defaults.
    slope_c = np.zeros(H, np.float32)
    bias_c = np.zeros(H, np.float32)
    start_c = np.zeros(H, np.int32)
    len_c = np.zeros(H, np.int32)
    for idx, sensor in enumerate(selected):
        L = int(length_h[idx])
        start = int(jax.random.randint(jax.random.fold_in(k_start, idx),
                                       (), 0, W - L + 1))
        # NOTE: slope/bias indexed by enumeration index `idx`, as in PyTorch.
        slope_c[sensor] = slope_h[idx]
        bias_c[sensor] = bias_h[idx]
        start_c[sensor] = start
        len_c[sensor] = L

    return (jnp.asarray(slope_c), jnp.asarray(bias_c),
            jnp.asarray(start_c), jnp.asarray(len_c))


# --------------------------------- demo ---------------------------------

if __name__ == "__main__":
    key = jax.random.PRNGKey(0)
    k_x, k_params = jax.random.split(key)

    B, H, W = 16, 8, 512          # batch, sensors (h), time samples (w)
    x = jax.random.normal(k_x, (B, H, W), dtype=jnp.float32)

    slope_c, bias_c, start_c, len_c = make_linear_trend_params(
        k_params, H, W, slope=(-1.0, 1.0), bias=(0.0, 0.0),
        length=None, channels=1)

    # Reference computed BEFORE the kernel call (x is donated / aliased).
    x_np = np.asarray(x)
    t = np.arange(W, dtype=np.int64)[None, :]
    start_np = np.asarray(start_c).astype(np.int64)[:, None]
    len_np = np.asarray(len_c).astype(np.int64)[:, None]
    mask = (t >= start_np) & (t < start_np + len_np)
    ramp = (t - start_np).astype(np.float32)
    trend_ref = np.where(mask,
                         np.asarray(slope_c)[:, None] * ramp
                         + np.asarray(bias_c)[:, None],
                         0.0).astype(np.float32)
    expected = x_np + trend_ref[None]

    # x donated at the jit boundary so input_output_aliases={0: 0} does not
    # force a defensive copy.  Small target block so the demo exercises a
    # multi-step row grid (128 rows -> 32-row tiles -> grid of 4).
    fwd = jax.jit(
        linear_trend_add, donate_argnums=(0,),
        static_argnames=("target_block_bytes", "vmem_limit_bytes",
                         "min_grid_steps"))
    out = fwd(x, slope_c, bias_c, start_c, len_c,
              target_block_bytes=64 << 10)
    out = jax.block_until_ready(out)

    np.testing.assert_allclose(np.asarray(out), expected,
                               rtol=1e-6, atol=1e-6)

    print("KERNEL_OK")
</pallas_src>

<mosaic_0001>
module attributes {stable_mosaic.version = 11 : i64} {
  func.func @linear_trend_kernel(%arg0: i32, %arg1: memref<32x512xf32, #tpu.memory_space<vmem>>, %arg2: memref<32x4xi32, #tpu.memory_space<vmem>>, %arg3: memref<32x512xf32, #tpu.memory_space<vmem>>) attributes {dimension_semantics = [#tpu.dimension_semantics<parallel>], iteration_bounds = array<i64: 4>, scalar_prefetch = 0 : i64, scratch_operands = 0 : i64, tpu.core_type = #tpu.core_type<tc>, window_params = [{transform_indices = @transform_0, window_bounds = array<i64: 32, 512>}, {transform_indices = @transform_1, window_bounds = array<i64: 32, 4>}, {transform_indices = @transform_2, window_bounds = array<i64: 32, 512>}]} {
    %c0 = arith.constant 0 : index
    %c0_0 = arith.constant 0 : index
    %0 = vector.load %arg2[%c0, %c0_0] : memref<32x4xi32, #tpu.memory_space<vmem>>, vector<32x4xi32>
    %1 = vector.extract_strided_slice %0 {offsets = [0, 0], sizes = [32, 1], strides = [1, 1]} : vector<32x4xi32> to vector<32x1xi32>
    %2 = tpu.bitcast %1 : vector<32x1xi32> -> vector<32x1xf32>
    %3 = vector.extract_strided_slice %0 {offsets = [0, 1], sizes = [32, 1], strides = [1, 1]} : vector<32x4xi32> to vector<32x1xi32>
    %4 = tpu.bitcast %3 : vector<32x1xi32> -> vector<32x1xf32>
    %5 = vector.extract_strided_slice %0 {offsets = [0, 2], sizes = [32, 1], strides = [1, 1]} : vector<32x4xi32> to vector<32x1xi32>
    %6 = vector.extract_strided_slice %0 {offsets = [0, 3], sizes = [32, 1], strides = [1, 1]} : vector<32x4xi32> to vector<32x1xi32>
    %7 = tpu.iota {dimensions = array<i32: 1>} : vector<32x512xi32>
    %8 = vector.broadcast %5 : vector<32x1xi32> to vector<32x512xi32>
    %9 = arith.subi %7, %8 : vector<32x512xi32>
    %10 = vector.broadcast %6 : vector<32x1xi32> to vector<32x512xi32>
    %11 = arith.cmpi ult, %9, %10 : vector<32x512xi32>
    %12 = arith.sitofp %9 : vector<32x512xi32> to vector<32x512xf32>
    %13 = vector.broadcast %2 : vector<32x1xf32> to vector<32x512xf32>
    %14 = arith.mulf %13, %12 : vector<32x512xf32>
    %15 = vector.broadcast %4 : vector<32x1xf32> to vector<32x512xf32>
    %16 = arith.addf %14, %15 : vector<32x512xf32>
    %cst = arith.constant 0.000000e+00 : f32
    %17 = vector.broadcast %cst : f32 to vector<32x512xf32>
    %18 = arith.select %11, %16, %17 : vector<32x512xi1>, vector<32x512xf32>
    %c0_1 = arith.constant 0 : index
    %c0_2 = arith.constant 0 : index
    %19 = vector.load %arg1[%c0_1, %c0_2] : memref<32x512xf32, #tpu.memory_space<vmem>>, vector<32x512xf32>
    %20 = arith.addf %19, %18 : vector<32x512xf32>
    %c0_3 = arith.constant 0 : index
    %c0_4 = arith.constant 0 : index
    %21 = vector.load %arg3[%c0_3, %c0_4] : memref<32x512xf32, #tpu.memory_space<vmem>>, vector<32x512xf32>
    tpu.vector_store %arg3[%c0_3, %c0_4], %20 {strides = array<i32>} : memref<32x512xf32, #tpu.memory_space<vmem>>, vector<32x512xf32>,
    return
  }
  func.func @transform_0(%arg0: i32) -> (i32, i32) {
    %c0_i32 = arith.constant 0 : i32
    %c0_i32_0 = arith.constant 0 : i32
    return %arg0, %c0_i32 : i32, i32
  }
  func.func @transform_1(%arg0: i32) -> (i32, i32) {
    %c0_i32 = arith.constant 0 : i32
    %c0_i32_0 = arith.constant 0 : i32
    return %arg0, %c0_i32 : i32, i32
  }
  func.func @transform_2(%arg0: i32) -> (i32, i32) {
    %c0_i32 = arith.constant 0 : i32
    %c0_i32_0 = arith.constant 0 : i32
    return %arg0, %c0_i32 : i32, i32
  }
}

</mosaic_0001>

<llo_original>
// kernel: linear_trend_add.1
$region0: #{linear_trend_add.1}
  #allocation0 [shape = 'u32[]', space=smem, size = 0x4, offset = 0x4, fixed_abs, tag = 'smem constant byte address 0x4 - core index']
  #allocation1 [shape = 'u32[72,128]{1,0:T(1,128)}', space=vmem, size = 0x9000, scoped, tag = 'internal scratch']
  %s0 = inlined_call_operand.hbm [shape: f32[128,512], index: 0, kind: input, shape index: {}, may-alias: {0,2}]
  %s1 = inlined_call_operand.vmem [shape: s32[128,4], index: 1, kind: input, shape index: {}]
  %s2 = inlined_call_operand.hbm [shape: f32[128,512], index: 2, kind: output, shape index: {}, may-alias: {0,2}]
  %s3 = sld [smem:[#allocation0]]
  $region45: #{linear_trend_add.1} parent=0
    _
  %s5 = ssub.s32 1, %s3
  %s6 = scalar_select 0, %s5, %s3
  $region1: #{linear_trend_add.1} parent=0
    #allocation2 [shape = 'u8[131072]{0}', space=vmem, size = 0x20000, scoped, tag = 'input window, operand 0']
    #allocation3 [shape = 's32[2]{0}', space=sflag, size = 0x8, scoped, tag = 'scoped memory for linear_trend_add.1']
    #allocation4 [shape = 's32[2]{0}', space=sflag, size = 0x8, scoped, tag = 'scoped memory for linear_trend_add.1']
    #allocation5 [shape = 'u8[131072]{0}', space=vmem, size = 0x20000, scoped, tag = 'output window, operand 0']
    %7 = vsyncpa [#allocation3], 0
    %s8 = scalar_lea.sflag [#allocation3], 1
    %9 = vsyncpa %s8, 0
    %10 = vsyncpa [#allocation4], 0
    %s11 = scalar_lea.sflag [#allocation4], 1
    %12 = vsyncpa %s11, 0
    loop: start=0, step=1, limit=6
    $region2: #{linear_trend_add.1} parent=1 // loop_pre_header
      _
    $region3: #{linear_trend_add.1} parent=1 // loop_header
      %s14 = sphi 0, %s18
      %p15 = scmp.ge.s32.totalorder %s14, 6
      %s24 = sphi 0, %s26
      %s27 = sphi 0, %s24
      %s28 = sphi 0, %s27
      %s44 = sphi 0, %s28
      %s50 = sphi 0, %s52
      %s53 = sphi 0, %s50
      %s54 = sphi 0, %s53
      %s70 = sphi 0, %s54
      %s76 = sphi 0, %s78
      %s79 = sphi 0, %s76
      %s80 = sphi 0, %s79
      %s96 = sphi 0, %s80
    $region4: #{linear_trend_add.1} parent=1 // loop_header_branch
      %17 = sbr.rel (%p15) target = $region8
    $region5: #{linear_trend_add.1} parent=1 // loop_body
      %s19 = ssub.s32 %s14, 1
      %s20 = ssub.s32 %s14, 2
      %s21 = sadd.s32 %s14, 1
      %s22 = ssub.s32 %s14, %s21
      %p23 = scmp.eq.s32.totalorder %s22, 0
      %s25 = sadd.s32 %s24, 1
      %s26 = scalar_select %p23, %s24, %s25
      %p29 = pneg %p23
      %p30 = scmp.eq.s32.totalorder %s14, 3
      %p31 = por %p29, %p30
      %p32 = scmp.ne.s32.totalorder %s24, %s27
      %p33 = scmp.eq.s32.totalorder %s14, 0
      %p34 = por %p32, %p33
      %p35 = scmp.ne.s32.totalorder %s24, %s27
      %p36 = scmp.eq.s32.totalorder %s19, 3
      %p37 = por %p35, %p36
      %p38 = scmp.ne.s32.totalorder %s27, %s28
      %p39 = scmp.eq.s32.totalorder %s19, 0
      %p40 = por %p38, %p39
      %p41 = scmp.ne.s32.totalorder %s27, %s28
      %p42 = scmp.eq.s32.totalorder %s20, 3
      %p43 = por %p41, %p42
      %p45 = scmp.ne.s32.totalorder %s28, %s44
      %p46 = scmp.eq.s32.totalorder %s20, 0
      %p47 = por %p45, %p46
      %s48 = ssub.s32 %s14, %s21
      %p49 = scmp.eq.s32.totalorder %s48, 0
      %s51 = sadd.s32 %s50, 1
      %s52 = scalar_select %p49, %s50, %s51
      %p55 = pneg %p49
      %p56 = scmp.eq.s32.totalorder %s14, 3
      %p57 = por %p55, %p56
      %p58 = scmp.ne.s32.totalorder %s50, %s53
      %p59 = scmp.eq.s32.totalorder %s14, 0
      %p60 = por %p58, %p59
      %p61 = scmp.ne.s32.totalorder %s50, %s53
      %p62 = scmp.eq.s32.totalorder %s19, 3
      %p63 = por %p61, %p62
      %p64 = scmp.ne.s32.totalorder %s53, %s54
      %p65 = scmp.eq.s32.totalorder %s19, 0
      %p66 = por %p64, %p65
      %p67 = scmp.ne.s32.totalorder %s53, %s54
      %p68 = scmp.eq.s32.totalorder %s20, 3
      %p69 = por %p67, %p68
      %p71 = scmp.ne.s32.totalorder %s54, %s70
      %p72 = scmp.eq.s32.totalorder %s20, 0
      %p73 = por %p71, %p72
      %s74 = ssub.s32 %s14, %s21
      %p75 = scmp.eq.s32.totalorder %s74, 0
      %s77 = sadd.s32 %s76, 1
      %s78 = scalar_select %p75, %s76, %s77
      %p81 = pneg %p75
      %p82 = scmp.eq.s32.totalorder %s14, 3
      %p83 = por %p81, %p82
      %p84 = scmp.ne.s32.totalorder %s76, %s79
      %p85 = scmp.eq.s32.totalorder %s14, 0
      %p86 = por %p84, %p85
      %p87 = scmp.ne.s32.totalorder %s76, %s79
      %p88 = scmp.eq.s32.totalorder %s19, 3
      %p89 = por %p87, %p88
      %p90 = scmp.ne.s32.totalorder %s79, %s80
      %p91 = scmp.eq.s32.totalorder %s19, 0
      %p92 = por %p90, %p91
      %p93 = scmp.ne.s32.totalorder %s79, %s80
      %p94 = scmp.eq.s32.totalorder %s20, 3
      %p95 = por %p93, %p94
      %p97 = scmp.ne.s32.totalorder %s80, %s96
      %p98 = scmp.eq.s32.totalorder %s20, 0
      %p99 = por %p97, %p98
      %p100 = scmp.le.s32.totalorder 1, %s14
      %p101 = scmp.lt.s32.totalorder %s14, 5
      %p102 = pnand %p100, %p101
      %p103 = pneg %p102
      // Predicated region
      $region9: #{linear_trend_add.1} parent=5 // pred_check
        _
      $region10: #{linear_trend_add.1} parent=5 // pred_check_branch
        %105 = sbr.rel (%p102) target = $region12
      $region11: #{linear_trend_add.1} parent=5 // pred_region
        %s106 = ssub.s32 %s14, 1
      $region12: #{linear_trend_add.1} parent=5 // pred_fallthru
        _
      %p107 = scmp.lt.s32.totalorder %s14, 4
      // Predicated region
      $region13: #{linear_trend_add.1} parent=5 // pred_check
        %p108 = pneg %p107
      $region14: #{linear_trend_add.1} parent=5 // pred_check_branch
        %110 = sbr.rel (%p108) target = $region16
      $region15: #{linear_trend_add.1} parent=5 // pred_region
        // Predicated region
        $region17: #{linear_trend_add.1} parent=15 // pred_check
          %p111 = pneg %p34
        $region18: #{linear_trend_add.1} parent=15 // pred_check_branch
          %113 = sbr.rel (%p111) target = $region20
        $region19: #{linear_trend_add.1} parent=15 // pred_region
          %s114 = sand.u32 %s24, 1
          %s115 = scalar_lea.sflag [#allocation3], %s114
          %s116 = sand.u32 %s24, 1
          %s117 = smul.addr %s116, 128
          %s118 = scalar_lea.vmem [#allocation2], %s117
          %s119 = smul.u32 4, %s14
          %121 = vsyncadd %s115, 0
          %s122 = smul.addr %s119, 4
          %s123 = smul.addr %s122, 8
          %s124 = scalar_lea.hbm %s0, %s123
          %s125 = sshll.u32 %s124, 4
          %s126 = int_to_ptr.hbm [resolvable:$true] %s125
          %s127 = sshll.u32 %s118, 4
          %s128 = int_to_ptr.vmem [resolvable:$true] %s127
          %133 = dma.hbm_to_vmem [thread:$0]  %s126, 2048, %s128, %s115, 512, 512, 32
        $region20: #{linear_trend_add.1} parent=15 // pred_fallthru
          _
        // Predicated region
        $region21: #{linear_trend_add.1} parent=15 // pred_check
          %p134 = pneg %p60
        $region22: #{linear_trend_add.1} parent=15 // pred_check_branch
          %136 = sbr.rel (%p134) target = $region24
        $region23: #{linear_trend_add.1} parent=15 // pred_region
          %s137 = smul.u32 4, %s14
          %p138 = scmp.lt.s32.totalorder %s137, 15
          %s139 = scalar_select %p138, %s137, 15
          %s140 = smul.addr %s139, 8
          %s141 = scalar_lea.vmem %s1, %s140
          %s142 = smul.u32 4, %s14
        $region24: #{linear_trend_add.1} parent=15 // pred_fallthru
          _
      $region16: #{linear_trend_add.1} parent=5 // pred_fallthru
        _
      %p143 = scmp.le.s32.totalorder 1, %s14
      %p144 = scmp.lt.s32.totalorder %s14, 5
      %p145 = pnand %p143, %p144
      %p146 = pneg %p145
      // Predicated region
      $region25: #{linear_trend_add.1} parent=5 // pred_check
        _
      $region26: #{linear_trend_add.1} parent=5 // pred_check_branch
        %148 = sbr.rel (%p145) target = $region28
      $region27: #{linear_trend_add.1} parent=5 // pred_region
        %s149 = ssub.s32 %s14, 1
        %s150 = sand.u32 %s27, 1
        %s151 = scalar_lea.sflag [#allocation3], %s150
        %s152 = sand.u32 %s27, 1
        %s153 = smul.addr %s152, 128
        %s154 = scalar_lea.vmem [#allocation2], %s153
        // Predicated region
        $region29: #{linear_trend_add.1} parent=27 // pred_check
          %p155 = pneg %p40
        $region30: #{linear_trend_add.1} parent=27 // pred_check_branch
          %157 = sbr.rel (%p155) target = $region32
        $region31: #{linear_trend_add.1} parent=27 // pred_region
          %159 = dma.done %s151, 2048
        $region32: #{linear_trend_add.1} parent=27 // pred_fallthru
          _
        %s160 = sand.u32 %s27, 1
        %s161 = scalar_lea.sflag [#allocation3], %s160
        %s162 = sand.u32 %s27, 1
        %s163 = smul.addr %s162, 128
        %s164 = scalar_lea.vmem [#allocation2], %s163
        %p165 = pneg %p40
        %p166 = pneg %p37
        %s167 = smul.u32 4, %s19
        %p168 = scmp.lt.s32.totalorder %s167, 15
        %s169 = scalar_select %p168, %s167, 15
        %s170 = smul.addr %s169, 8
        %s171 = scalar_lea.vmem %s1, %s170
        %p172 = pneg %p66
        %p173 = pneg %p63
        %p174 = pneg %p92
        %p175 = pneg %p89
        %s176 = sand.u32 %s79, 1
        %s177 = scalar_lea.sflag [#allocation4], %s176
        %s178 = sand.u32 %s79, 1
        %s179 = smul.addr %s178, 128
        %s180 = scalar_lea.vmem [#allocation5], %s179
        %s181 = smul.u32 4, %s19
        %s182 = smul.u32 4, %s19
        %p183 = scmp.lt.s32.totalorder %s182, 15
        %s184 = scalar_select %p183, %s182, 15
        %s185 = smul.addr %s184, 8
        %s186 = scalar_lea.vmem %s1, %s185
        %s187 = smul.u32 4, %s19
        %s188 = smul.u32 4, %s19
        %v189 = vld [vmem:[%s186] sm:$0xff]
        %v190 = vld [vmem:[%s186 + $0x8] sm:$0xff]
        %v191 = vld [vmem:[%s186 + $0x10] sm:$0xff]
        %v192 = vld [vmem:[%s186 + $0x18] sm:$0xff]
        %v193 = vlaneseq
        %v194 = vand.u32 %v193, 127
        %v195 = vadd.s32 %v194, 128
        %v196 = vadd.s32 %v194, 256
        %v197 = vadd.s32 %v194, 384
        %198 = vset.pattern.permute.xlu0 2
        %199 = vperm.xlu0 %198, %v189
        %v200 = vpop.permute.xlu0 %199
        %201 = vset.pattern.permute.xlu0 2
        %202 = vperm.xlu0 %201, %v190
        %v203 = vpop.permute.xlu0 %202
        %204 = vset.pattern.permute.xlu0 2
        %205 = vperm.xlu0 %204, %v191
        %v206 = vpop.permute.xlu0 %205
        %207 = vset.pattern.permute.xlu0 2
        %208 = vperm.xlu0 %207, %v192
        %v209 = vpop.permute.xlu0 %208
        %v210 = vsub.s32 %v194, %v200
        %v211 = vsub.s32 %v195, %v200
        %v212 = vsub.s32 %v196, %v200
        %v213 = vsub.s32 %v197, %v200
        %v214 = vsub.s32 %v194, %v203
        %v215 = vsub.s32 %v195, %v203
        %v216 = vsub.s32 %v196, %v203
        %v217 = vsub.s32 %v197, %v203
        %v218 = vsub.s32 %v194, %v206
        %v219 = vsub.s32 %v195, %v206
        %v220 = vsub.s32 %v196, %v206
        %v221 = vsub.s32 %v197, %v206
        %v222 = vsub.s32 %v194, %v209
        %v223 = vsub.s32 %v195, %v209
        %v224 = vsub.s32 %v196, %v209
        %v225 = vsub.s32 %v197, %v209
        %226 = vset.pattern.permute.xlu0 3
        %227 = vperm.xlu0 %226, %v189
        %v228 = vpop.permute.xlu0 %227
        %229 = vset.pattern.permute.xlu0 3
        %230 = vperm.xlu0 %229, %v190
        %v231 = vpop.permute.xlu0 %230
        %232 = vset.pattern.permute.xlu0 3
        %233 = vperm.xlu0 %232, %v191
        %v234 = vpop.permute.xlu0 %233
        %235 = vset.pattern.permute.xlu0 3
        %236 = vperm.xlu0 %235, %v192
        %v237 = vpop.permute.xlu0 %236
        %v238 = vadd.s32 %v210, 2147483648
        %v239 = vadd.s32 %v228, 2147483648
        %vm240 = vcmp.lt.s32.totalorder %v238, %v239
        %v241 = vadd.s32 %v211, 2147483648
        %v242 = vadd.s32 %v228, 2147483648
        %vm243 = vcmp.lt.s32.totalorder %v241, %v242
        %v244 = vadd.s32 %v212, 2147483648
        %v245 = vadd.s32 %v228, 2147483648
        %vm246 = vcmp.lt.s32.totalorder %v244, %v245
        %v247 = vadd.s32 %v213, 2147483648
        %v248 = vadd.s32 %v228, 2147483648
        %vm249 = vcmp.lt.s32.totalorder %v247, %v248
        %v250 = vadd.s32 %v214, 2147483648
        %v251 = vadd.s32 %v231, 2147483648
        %vm252 = vcmp.lt.s32.totalorder %v250, %v251
        %v253 = vadd.s32 %v215, 2147483648
        %v254 = vadd.s32 %v231, 2147483648
        %vm255 = vcmp.lt.s32.totalorder %v253, %v254
        %v256 = vadd.s32 %v216, 2147483648
        %v257 = vadd.s32 %v231, 2147483648
        %vm258 = vcmp.lt.s32.totalorder %v256, %v257
        %v259 = vadd.s32 %v217, 2147483648
        %v260 = vadd.s32 %v231, 2147483648
        %vm261 = vcmp.lt.s32.totalorder %v259, %v260
        %v262 = vadd.s32 %v218, 2147483648
        %v263 = vadd.s32 %v234, 2147483648
        %vm264 = vcmp.lt.s32.totalorder %v262, %v263
        %v265 = vadd.s32 %v219, 2147483648
        %v266 = vadd.s32 %v234, 2147483648
        %vm267 = vcmp.lt.s32.totalorder %v265, %v266
        %v268 = vadd.s32 %v220, 2147483648
        %v269 = vadd.s32 %v234, 2147483648
        %vm270 = vcmp.lt.s32.totalorder %v268, %v269
        %v271 = vadd.s32 %v221, 2147483648
        %v272 = vadd.s32 %v234, 2147483648
        %vm273 = vcmp.lt.s32.totalorder %v271, %v272
        %v274 = vadd.s32 %v222, 2147483648
        %v275 = vadd.s32 %v237, 2147483648
        %vm276 = vcmp.lt.s32.totalorder %v274, %v275
        %v277 = vadd.s32 %v223, 2147483648
        %v278 = vadd.s32 %v237, 2147483648
        %vm279 = vcmp.lt.s32.totalorder %v277, %v278
        %v280 = vadd.s32 %v224, 2147483648
        %v281 = vadd.s32 %v237, 2147483648
        %vm282 = vcmp.lt.s32.totalorder %v280, %v281
        %v283 = vadd.s32 %v225, 2147483648
        %v284 = vadd.s32 %v237, 2147483648
        %vm285 = vcmp.lt.s32.totalorder %v283, %v284
        %v286 = vcvt.s32.f32 %v210
        %v287 = vcvt.s32.f32 %v211
        %v288 = vcvt.s32.f32 %v212
        %v289 = vcvt.s32.f32 %v213
        %v290 = vcvt.s32.f32 %v214
        %v291 = vcvt.s32.f32 %v215
        %v292 = vcvt.s32.f32 %v216
        %v293 = vcvt.s32.f32 %v217
        %v294 = vcvt.s32.f32 %v218
        %v295 = vcvt.s32.f32 %v219
        %v296 = vcvt.s32.f32 %v220
        %v297 = vcvt.s32.f32 %v221
        %v298 = vcvt.s32.f32 %v222
        %v299 = vcvt.s32.f32 %v223
        %v300 = vcvt.s32.f32 %v224
        %v301 = vcvt.s32.f32 %v225
        %302 = vset.pattern.permute.xlu0 0
        %303 = vperm.xlu0 %302, %v189
        %v304 = vpop.permute.xlu0 %303
        %306 = vset.pattern.permute.xlu0 0
        %307 = vperm.xlu0 %306, %v190
        %v308 = vpop.permute.xlu0 %307
        %310 = vset.pattern.permute.xlu0 0
        %311 = vperm.xlu0 %310, %v191
        %v312 = vpop.permute.xlu0 %311
        %314 = vset.pattern.permute.xlu0 0
        %315 = vperm.xlu0 %314, %v192
        %v316 = vpop.permute.xlu0 %315
        %v318 = vmul.f32 %v304, %v286
        %v319 = vmul.f32 %v304, %v287
        %v320 = vmul.f32 %v304, %v288
        %v321 = vmul.f32 %v304, %v289
        %v322 = vmul.f32 %v308, %v290
        %v323 = vmul.f32 %v308, %v291
        %v324 = vmul.f32 %v308, %v292
        %v325 = vmul.f32 %v308, %v293
        %v326 = vmul.f32 %v312, %v294
        %v327 = vmul.f32 %v312, %v295
        %v328 = vmul.f32 %v312, %v296
        %v329 = vmul.f32 %v312, %v297
        %v330 = vmul.f32 %v316, %v298
        %v331 = vmul.f32 %v316, %v299
        %v332 = vmul.f32 %v316, %v300
        %v333 = vmul.f32 %v316, %v301
        %334 = vset.pattern.permute.xlu0 1
        %335 = vperm.xlu0 %334, %v189
        %v336 = vpop.permute.xlu0 %335
        %338 = vset.pattern.permute.xlu0 1
        %339 = vperm.xlu0 %338, %v190
        %v340 = vpop.permute.xlu0 %339
        %342 = vset.pattern.permute.xlu0 1
        %343 = vperm.xlu0 %342, %v191
        %v344 = vpop.permute.xlu0 %343
        %346 = vset.pattern.permute.xlu0 1
        %347 = vperm.xlu0 %346, %v192
        %v348 = vpop.permute.xlu0 %347
        %v350 = vadd.f32 %v318, %v336
        %v351 = vadd.f32 %v319, %v336
        %v352 = vadd.f32 %v320, %v336
        %v353 = vadd.f32 %v321, %v336
        %v354 = vadd.f32 %v322, %v340
        %v355 = vadd.f32 %v323, %v340
        %v356 = vadd.f32 %v324, %v340
        %v357 = vadd.f32 %v325, %v340
        %v358 = vadd.f32 %v326, %v344
        %v359 = vadd.f32 %v327, %v344
        %v360 = vadd.f32 %v328, %v344
        %v361 = vadd.f32 %v329, %v344
        %v362 = vadd.f32 %v330, %v348
        %v363 = vadd.f32 %v331, %v348
        %v364 = vadd.f32 %v332, %v348
        %v365 = vadd.f32 %v333, %v348
        %v366 = vsel %vm240, %v350, 0.0
        %v367 = vsel %vm243, %v351, 0.0
        %v368 = vsel %vm246, %v352, 0.0
        %v369 = vsel %vm249, %v353, 0.0
        %v370 = vsel %vm252, %v354, 0.0
        %v371 = vsel %vm255, %v355, 0.0
        %v372 = vsel %vm258, %v356, 0.0
        %v373 = vsel %vm261, %v357, 0.0
        %v374 = vsel %vm264, %v358, 0.0
        %v375 = vsel %vm267, %v359, 0.0
        %v376 = vsel %vm270, %v360, 0.0
        %v377 = vsel %vm273, %v361, 0.0
        %v378 = vsel %vm276, %v362, 0.0
        %v379 = vsel %vm279, %v363, 0.0
        %v380 = vsel %vm282, %v364, 0.0
        %v381 = vsel %vm285, %v365, 0.0
        %v382 = vld [vmem:[%s154] sm:$0xff]
        %v383 = vld [vmem:[%s154 + $0x8] sm:$0xff]
        %v384 = vld [vmem:[%s154 + $0x10] sm:$0xff]
        %v385 = vld [vmem:[%s154 + $0x18] sm:$0xff]
        %v386 = vld [vmem:[%s154 + $0x20] sm:$0xff]
        %v387 = vld [vmem:[%s154 + $0x28] sm:$0xff]
        %v388 = vld [vmem:[%s154 + $0x30] sm:$0xff]
        %v389 = vld [vmem:[%s154 + $0x38] sm:$0xff]
        %v390 = vld [vmem:[%s154 + $0x40] sm:$0xff]
        %v391 = vld [vmem:[%s154 + $0x48] sm:$0xff]
        %v392 = vld [vmem:[%s154 + $0x50] sm:$0xff]
        %v393 = vld [vmem:[%s154 + $0x58] sm:$0xff]
        %v394 = vld [vmem:[%s154 + $0x60] sm:$0xff]
        %v395 = vld [vmem:[%s154 + $0x68] sm:$0xff]
        %v396 = vld [vmem:[%s154 + $0x70] sm:$0xff]
        %v397 = vld [vmem:[%s154 + $0x78] sm:$0xff]
        %v398 = vadd.f32 %v382, %v366
        %v399 = vadd.f32 %v383, %v367
        %v400 = vadd.f32 %v384, %v368
        %v401 = vadd.f32 %v385, %v369
        %v402 = vadd.f32 %v386, %v370
        %v403 = vadd.f32 %v387, %v371
        %v404 = vadd.f32 %v388, %v372
        %v405 = vadd.f32 %v389, %v373
        %v406 = vadd.f32 %v390, %v374
        %v407 = vadd.f32 %v391, %v375
        %v408 = vadd.f32 %v392, %v376
        %v409 = vadd.f32 %v393, %v377
        %v410 = vadd.f32 %v394, %v378
        %v411 = vadd.f32 %v395, %v379
        %v412 = vadd.f32 %v396, %v380
        %v413 = vadd.f32 %v397, %v381
        %414 = vst [vmem:[%s180] sm:$0xff] %v398
        %415 = vst [vmem:[%s180 + $0x8] sm:$0xff] %v399
        %416 = vst [vmem:[%s180 + $0x10] sm:$0xff] %v400
        %417 = vst [vmem:[%s180 + $0x18] sm:$0xff] %v401
        %418 = vst [vmem:[%s180 + $0x20] sm:$0xff] %v402
        %419 = vst [vmem:[%s180 + $0x28] sm:$0xff] %v403
        %420 = vst [vmem:[%s180 + $0x30] sm:$0xff] %v404
        %421 = vst [vmem:[%s180 + $0x38] sm:$0xff] %v405
        %422 = vst [vmem:[%s180 + $0x40] sm:$0xff] %v406
        %423 = vst [vmem:[%s180 + $0x48] sm:$0xff] %v407
        %424 = vst [vmem:[%s180 + $0x50] sm:$0xff] %v408
        %425 = vst [vmem:[%s180 + $0x58] sm:$0xff] %v409
        %426 = vst [vmem:[%s180 + $0x60] sm:$0xff] %v410
        %427 = vst [vmem:[%s180 + $0x68] sm:$0xff] %v411
        %428 = vst [vmem:[%s180 + $0x70] sm:$0xff] %v412
        %429 = vst [vmem:[%s180 + $0x78] sm:$0xff] %v413
        %s430 = sand.u32 %s79, 1
        %s431 = scalar_lea.sflag [#allocation4], %s430
        %s432 = sand.u32 %s79, 1
        %s433 = smul.addr %s432, 128
        %s434 = scalar_lea.vmem [#allocation5], %s433
        // Predicated region
        $region33: #{linear_trend_add.1} parent=27 // pred_check
          %p435 = pneg %p89
        $region34: #{linear_trend_add.1} parent=27 // pred_check_branch
          %437 = sbr.rel (%p435) target = $region36
        $region35: #{linear_trend_add.1} parent=27 // pred_region
          %s438 = smul.u32 4, %s19
          %440 = vsyncadd %s431, 0
          %s441 = smul.addr %s438, 4
          %s442 = smul.addr %s441, 8
          %s443 = scalar_lea.hbm %s2, %s442
          %s444 = sshll.u32 %s434, 4
          %s445 = int_to_ptr.vmem [resolvable:$true] %s444
          %s446 = sshll.u32 %s443, 4
          %s447 = int_to_ptr.hbm [resolvable:$true] %s446
          %452 = dma.vmem_to_hbm [thread:$0]  %s445, 2048, %s447, %s431, 512, 512, 32
        $region36: #{linear_trend_add.1} parent=27 // pred_fallthru
          _
      $region28: #{linear_trend_add.1} parent=5 // pred_fallthru
        _
      %p453 = scmp.le.s32.totalorder 2, %s14
      // Predicated region
      $region37: #{linear_trend_add.1} parent=5 // pred_check
        %p454 = pneg %p453
      $region38: #{linear_trend_add.1} parent=5 // pred_check_branch
        %456 = sbr.rel (%p454) target = $region40
      $region39: #{linear_trend_add.1} parent=5 // pred_region
        %s457 = ssub.s32 %s14, 2
        // Predicated region
        $region41: #{linear_trend_add.1} parent=39 // pred_check
          %p458 = pneg %p95
        $region42: #{linear_trend_add.1} parent=39 // pred_check_branch
          %460 = sbr.rel (%p458) target = $region44
        $region43: #{linear_trend_add.1} parent=39 // pred_region
          %s461 = sand.u32 %s80, 1
          %s462 = scalar_lea.sflag [#allocation4], %s461
          %s463 = sand.u32 %s80, 1
          %s464 = smul.addr %s463, 128
          %s465 = scalar_lea.vmem [#allocation5], %s464
          %467 = dma.done %s462, 2048
        $region44: #{linear_trend_add.1} parent=39 // pred_fallthru
          _
      $region40: #{linear_trend_add.1} parent=5 // pred_fallthru
        _
    $region6: #{linear_trend_add.1} parent=1 // loop_footer
      %s18 = sadd.s32 1, %s14
    $region7: #{linear_trend_add.1} parent=1 // loop_footer_branch
      %13 = sbr.rel target = $region3
    $region8: #{linear_trend_add.1} parent=1 // loop_exit
      _
    %468 = vsyncpa [#allocation3], 1
    %s469 = scalar_lea.sflag [#allocation3], 1
    %470 = vsyncpa %s469, 1
    %471 = vsyncpa [#allocation4], 1
    %s472 = scalar_lea.sflag [#allocation4], 1
    %473 = vsyncpa %s472, 1

</llo_original>
